<compile_context>
chip_gen: v6e
topology: v6e:2x2x1
jax: 0.10.0
libtpu: 0.0.40
codegen_flags: <defaults>
</compile_context>

<pallas_src>
import math

import jax
import jax.numpy as jnp
from jax.experimental import pallas as pl
from jax.experimental.pallas import tpu as pltpu

LANE = 128
SMALL_INPUT_THRESHOLD = 1 << 20   # below this, plain jnp is faster than a kernel launch


def _make_loss_kernel(diff_in_input_dtype):
    def _loss_kernel(dr_ref, dfr_ref, nb_ref, nfr_ref,
                     db_ref, dfb_ref, nr_ref, nfb_ref,
                     out_ref, acc_ref):
        i = pl.program_id(1)

        @pl.when(i == 0)
        def _init():
            acc_ref[...] = jnp.zeros_like(acc_ref)

        def sqdiff(a_ref, b_ref):
            if diff_in_input_dtype:
                d = (a_ref[...] - b_ref[...]).astype(jnp.float32)
            else:
                d = a_ref[...].astype(jnp.float32) - b_ref[...].astype(jnp.float32)
            return d * d

        acc_ref[...] += (sqdiff(dr_ref, dfr_ref) + sqdiff(nb_ref, nfr_ref)
                         + sqdiff(db_ref, dfb_ref) + sqdiff(nr_ref, nfb_ref))

        @pl.when(i == pl.num_programs(1) - 1)
        def _finalize():
            out_ref[0, 0] = jnp.sum(acc_ref[...])

    return _loss_kernel


def _jnp_loss(paired_inputs):
    dr, dfr, nb, nfr, db, dfb, nr, nfb = [
        x.astype(jnp.float32) for x in paired_inputs]
    return jnp.mean((dr - dfr) ** 2 + (nb - nfr) ** 2
                    + (db - dfb) ** 2 + (nr - nfb) ** 2)


def _default_num_chunks():
    """2 chunks (one per TensorCore) on v7x, 1 on single-TC v5e/v6e."""
    try:
        kind = jax.devices()[0].device_kind.lower()
    except Exception:
        return 1
    return 2 if ("v7" in kind or "7x" in kind) else 1


def basic_loss_fake(denoise_red, noise_blue, denoise_blue, noise_red,
                    denoise_fake_red, noise_fake_red,
                    denoise_fake_blue, noise_fake_blue,
                    *, tile_rows=1024, num_chunks=None,
                    diff_in_input_dtype=False, use_pallas=None):
    """Pallas implementation of BasicLoss_fake.forward. Returns a scalar f32."""
    shape = denoise_red.shape
    n_elems = math.prod(shape)

    # Pair operands the way the PyTorch forward subtracts them.
    paired = (denoise_red, denoise_fake_red,
              noise_blue, noise_fake_red,
              denoise_blue, denoise_fake_blue,
              noise_red, noise_fake_blue)
    for x in paired:
        assert x.shape == shape, "all inputs must share the same shape"

    if use_pallas is None:
        use_pallas = (n_elems >= SMALL_INPUT_THRESHOLD) and (n_elems % LANE == 0)

    # Lane-unaligned element counts would need a (copying) pad to reshape to
    # (rows, 128); XLA's fused elementwise+reduce is the better choice there.
    if (not use_pallas) or (n_elems % LANE != 0):
        return _jnp_loss(paired)

    # --- tiling -----------------------------------------------------------
    rows = n_elems // LANE

    # Sublane granularity: 8 rows for 32-bit dtypes, 16 for bf16/f16, 32 for
    # 8-bit, so every block matches the native packed tile.
    granule = 8
    for x in paired:
        itemsize = jnp.dtype(x.dtype).itemsize
        granule = max(granule, 8 * max(1, 4 // max(1, itemsize)))

    tile_rows = max(granule, (min(tile_rows, rows) // granule) * granule)
    tiles_full = rows // tile_rows
    if tiles_full == 0:
        return _jnp_loss(paired)

    if num_chunks is None:
        num_chunks = _default_num_chunks()
    num_chunks = max(1, min(num_chunks, tiles_full))

    tiles_per_chunk = tiles_full // num_chunks
    rows_main = num_chunks * tiles_per_chunk * tile_rows   # rows covered by kernel
    n_main = rows_main * LANE

    # Free, copy-less reshape to a lane-dense slab (n_elems % 128 == 0).
    flat_inputs = tuple(x.reshape(rows, LANE) for x in paired)

    in_spec = pl.BlockSpec((tile_rows, LANE),
                           lambda c, i: (c * tiles_per_chunk + i, 0))
    out_spec = pl.BlockSpec((1, 1), lambda c, i: (c, 0),
                            memory_space=pltpu.SMEM)

    if num_chunks > 1:
        # v7x: guarantee the chunk axis is sharded across the 2 TensorCores.
        dim_sem = (pltpu.CORE_PARALLEL, pltpu.ARBITRARY)
    else:
        dim_sem = (pltpu.ARBITRARY, pltpu.ARBITRARY)

    # Explicit scoped-VMEM budget: 2 pipeline buffers per input + f32 acc
    # scratch + headroom, so larger tiles also work within v5e's 16 MiB
    # default and stay well under v7x's 64 MiB physical VMEM.
    in_tile_bytes = sum(tile_rows * LANE * jnp.dtype(x.dtype).itemsize
                        for x in paired)
    vmem_needed = 2 * in_tile_bytes + tile_rows * LANE * 4
    vmem_limit = int(min(max(vmem_needed + (4 << 20), 16 << 20), 64 << 20))

    bytes_accessed = sum(rows_main * LANE * jnp.dtype(x.dtype).itemsize
                         for x in paired) + num_chunks * 4
    cost = pl.CostEstimate(flops=12 * n_main, transcendentals=0,
                           bytes_accessed=bytes_accessed)

    partials = pl.pallas_call(
        _make_loss_kernel(diff_in_input_dtype),
        out_shape=jax.ShapeDtypeStruct((num_chunks, 1), jnp.float32),
        grid_spec=pltpu.PrefetchScalarGridSpec(
            num_scalar_prefetch=0,
            grid=(num_chunks, tiles_per_chunk),
            in_specs=[in_spec] * 8,
            out_specs=out_spec,
            scratch_shapes=[pltpu.VMEM((tile_rows, LANE), jnp.float32)],
        ),
        compiler_params=pltpu.CompilerParams(
            dimension_semantics=dim_sem,
            vmem_limit_bytes=vmem_limit),
        cost_estimate=cost,
    )(*flat_inputs)

    total = jnp.sum(partials)

    # Unaligned tail (< num_chunks*tile_rows rows): tiny fused jnp reduce.
    # These elements are read exactly once (by XLA instead of the kernel),
    # so there is no duplicated HBM traffic and no pad copy.
    if rows_main < rows:
        dr, dfr, nb, nfr, db, dfb, nr, nfb = [
            x[rows_main:].astype(jnp.float32) for x in flat_inputs]
        total = total + jnp.sum((dr - dfr) ** 2 + (nb - nfr) ** 2
                                + (db - dfb) ** 2 + (nr - nfb) ** 2)

    return total / jnp.float32(n_elems)


if __name__ == "__main__":
    key = jax.random.PRNGKey(0)
    shape = (2, 4, 16, 16)   # 2048 elements = 16 lane-rows of 128
    keys = jax.random.split(key, 8)
    (denoise_red, noise_blue, denoise_blue, noise_red,
     denoise_fake_red, noise_fake_red,
     denoise_fake_blue, noise_fake_blue) = [
        jax.random.normal(k, shape, dtype=jnp.float32) for k in keys]

    args = (denoise_red, noise_blue, denoise_blue, noise_red,
            denoise_fake_red, noise_fake_red,
            denoise_fake_blue, noise_fake_blue)

    def reference(a):
        dr, nb, db, nr, dfr, nfr, dfb, nfb = [x.astype(jnp.float32) for x in a]
        return jnp.mean((dr - dfr) ** 2 + (nb - nfr) ** 2
                        + (db - dfb) ** 2 + (nr - nfb) ** 2)

    # Force the Pallas path even at this small size so the kernel runs here.
    loss = jax.block_until_ready(basic_loss_fake(*args, use_pallas=True))
    ref = reference(args)
    assert jnp.allclose(loss, ref, rtol=1e-5, atol=1e-6), (loss, ref)

    # Auto path (small-input jnp fallback) must agree too.
    loss_auto = jax.block_until_ready(basic_loss_fake(*args))
    assert jnp.allclose(loss_auto, ref, rtol=1e-5, atol=1e-6), (loss_auto, ref)

    # Shape whose row count does not divide the tile: exercises the
    # kernel-main + jnp-tail split (30 rows -> 24 in-kernel, 6 in the tail).
    shape2 = (3, 5, 16, 16)  # 3840 elements = 30 lane-rows of 128
    keys2 = jax.random.split(jax.random.PRNGKey(1), 8)
    args2 = tuple(jax.random.normal(k, shape2, dtype=jnp.float32) for k in keys2)
    loss2 = jax.block_until_ready(basic_loss_fake(*args2, use_pallas=True))
    ref2 = reference(args2)
    assert jnp.allclose(loss2, ref2, rtol=1e-5, atol=1e-6), (loss2, ref2)

    # Native-dtype path: bf16 inputs are cast to f32 inside the kernel.
    bf16 = tuple(x.astype(jnp.bfloat16) for x in args)
    loss_bf16 = jax.block_until_ready(basic_loss_fake(*bf16, use_pallas=True))
    ref_bf16 = reference(bf16)
    assert jnp.allclose(loss_bf16, ref_bf16, rtol=1e-4, atol=1e-6), (
        loss_bf16, ref_bf16)

    print("KERNEL_OK")
</pallas_src>

<mosaic_0001>
module attributes {stable_mosaic.version = 11 : i64} {
  func.func @_loss_kernel(%arg0: i32, %arg1: i32, %arg2: memref<16x128xf32, #tpu.memory_space<vmem>>, %arg3: memref<16x128xf32, #tpu.memory_space<vmem>>, %arg4: memref<16x128xf32, #tpu.memory_space<vmem>>, %arg5: memref<16x128xf32, #tpu.memory_space<vmem>>, %arg6: memref<16x128xf32, #tpu.memory_space<vmem>>, %arg7: memref<16x128xf32, #tpu.memory_space<vmem>>, %arg8: memref<16x128xf32, #tpu.memory_space<vmem>>, %arg9: memref<16x128xf32, #tpu.memory_space<vmem>>, %arg10: memref<1x1xf32, #tpu.memory_space<smem>>, %arg11: memref<16x128xf32, #tpu.memory_space<vmem>>) attributes {dimension_semantics = [#tpu.dimension_semantics<arbitrary>, #tpu.dimension_semantics<arbitrary>], iteration_bounds = array<i64: 1, 1>, scalar_prefetch = 0 : i64, scratch_operands = 1 : i64, tpu.core_type = #tpu.core_type<tc>, window_params = [{transform_indices = @transform_0, window_bounds = array<i64: 16, 128>}, {transform_indices = @transform_1, window_bounds = array<i64: 16, 128>}, {transform_indices = @transform_2, window_bounds = array<i64: 16, 128>}, {transform_indices = @transform_3, window_bounds = array<i64: 16, 128>}, {transform_indices = @transform_4, window_bounds = array<i64: 16, 128>}, {transform_indices = @transform_5, window_bounds = array<i64: 16, 128>}, {transform_indices = @transform_6, window_bounds = array<i64: 16, 128>}, {transform_indices = @transform_7, window_bounds = array<i64: 16, 128>}, {transform_indices = @transform_8, window_bounds = array<i64: 1, 1>}]} {
    %c0_i32 = arith.constant 0 : i32
    %0 = arith.cmpi eq, %arg1, %c0_i32 : i32
    %1 = arith.extui %0 : i1 to i32
    %c0_i32_0 = arith.constant 0 : i32
    %2 = arith.cmpi ne, %1, %c0_i32_0 : i32
    scf.if %2 {
      %cst = arith.constant 0.000000e+00 : f32
      %28 = vector.broadcast %cst : f32 to vector<16x128xf32>
      %c0_22 = arith.constant 0 : index
      %c0_23 = arith.constant 0 : index
      %29 = vector.load %arg11[%c0_22, %c0_23] : memref<16x128xf32, #tpu.memory_space<vmem>>, vector<16x128xf32>
      tpu.vector_store %arg11[%c0_22, %c0_23], %28 {strides = array<i32>} : memref<16x128xf32, #tpu.memory_space<vmem>>, vector<16x128xf32>,
    } else {
    }
    %c0 = arith.constant 0 : index
    %c0_1 = arith.constant 0 : index
    %3 = vector.load %arg11[%c0, %c0_1] : memref<16x128xf32, #tpu.memory_space<vmem>>, vector<16x128xf32>
    %c0_2 = arith.constant 0 : index
    %c0_3 = arith.constant 0 : index
    %4 = vector.load %arg2[%c0_2, %c0_3] : memref<16x128xf32, #tpu.memory_space<vmem>>, vector<16x128xf32>
    %c0_4 = arith.constant 0 : index
    %c0_5 = arith.constant 0 : index
    %5 = vector.load %arg3[%c0_4, %c0_5] : memref<16x128xf32, #tpu.memory_space<vmem>>, vector<16x128xf32>
    %6 = arith.subf %4, %5 : vector<16x128xf32>
    %7 = arith.mulf %6, %6 : vector<16x128xf32>
    %c0_6 = arith.constant 0 : index
    %c0_7 = arith.constant 0 : index
    %8 = vector.load %arg4[%c0_6, %c0_7] : memref<16x128xf32, #tpu.memory_space<vmem>>, vector<16x128xf32>
    %c0_8 = arith.constant 0 : index
    %c0_9 = arith.constant 0 : index
    %9 = vector.load %arg5[%c0_8, %c0_9] : memref<16x128xf32, #tpu.memory_space<vmem>>, vector<16x128xf32>
    %10 = arith.subf %8, %9 : vector<16x128xf32>
    %11 = arith.mulf %10, %10 : vector<16x128xf32>
    %12 = arith.addf %7, %11 : vector<16x128xf32>
    %c0_10 = arith.constant 0 : index
    %c0_11 = arith.constant 0 : index
    %13 = vector.load %arg6[%c0_10, %c0_11] : memref<16x128xf32, #tpu.memory_space<vmem>>, vector<16x128xf32>
    %c0_12 = arith.constant 0 : index
    %c0_13 = arith.constant 0 : index
    %14 = vector.load %arg7[%c0_12, %c0_13] : memref<16x128xf32, #tpu.memory_space<vmem>>, vector<16x128xf32>
    %15 = arith.subf %13, %14 : vector<16x128xf32>
    %16 = arith.mulf %15, %15 : vector<16x128xf32>
    %17 = arith.addf %12, %16 : vector<16x128xf32>
    %c0_14 = arith.constant 0 : index
    %c0_15 = arith.constant 0 : index
    %18 = vector.load %arg8[%c0_14, %c0_15] : memref<16x128xf32, #tpu.memory_space<vmem>>, vector<16x128xf32>
    %c0_16 = arith.constant 0 : index
    %c0_17 = arith.constant 0 : index
    %19 = vector.load %arg9[%c0_16, %c0_17] : memref<16x128xf32, #tpu.memory_space<vmem>>, vector<16x128xf32>
    %20 = arith.subf %18, %19 : vector<16x128xf32>
    %21 = arith.mulf %20, %20 : vector<16x128xf32>
    %22 = arith.addf %17, %21 : vector<16x128xf32>
    %23 = arith.addf %3, %22 : vector<16x128xf32>
    %c0_18 = arith.constant 0 : index
    %c0_19 = arith.constant 0 : index
    %24 = vector.load %arg11[%c0_18, %c0_19] : memref<16x128xf32, #tpu.memory_space<vmem>>, vector<16x128xf32>
    tpu.vector_store %arg11[%c0_18, %c0_19], %23 {strides = array<i32>} : memref<16x128xf32, #tpu.memory_space<vmem>>, vector<16x128xf32>,
    %c0_i32_20 = arith.constant 0 : i32
    %25 = arith.cmpi eq, %arg1, %c0_i32_20 : i32
    %26 = arith.extui %25 : i1 to i32
    %c0_i32_21 = arith.constant 0 : i32
    %27 = arith.cmpi ne, %26, %c0_i32_21 : i32
    scf.if %27 {
      %c0_22 = arith.constant 0 : index
      %c0_23 = arith.constant 0 : index
      %28 = vector.load %arg11[%c0_22, %c0_23] : memref<16x128xf32, #tpu.memory_space<vmem>>, vector<16x128xf32>
      %29 = vector.shape_cast %28 : vector<16x128xf32> to vector<1x16x128xf32>
      %cst = arith.constant dense<0.000000e+00> : vector<1xf32>
      %30 = vector.multi_reduction <add>, %29, %cst [1, 2] : vector<1x16x128xf32> to vector<1xf32>
      %31 = vector.shape_cast %30 : vector<1xf32> to vector<1x1x1xf32>
      %32 = vector.extract %31[0, 0, 0] : f32 from vector<1x1x1xf32>
      %c0_24 = arith.constant 0 : index
      %c0_25 = arith.constant 0 : index
      %33 = memref.load %arg10[%c0_24, %c0_25] : memref<1x1xf32, #tpu.memory_space<smem>>
      memref.store %32, %arg10[%c0_24, %c0_25] : memref<1x1xf32, #tpu.memory_space<smem>>
    } else {
    }
    return
  }
  func.func @transform_0(%arg0: i32, %arg1: i32) -> (i32, i32) {
    %c1_i32 = arith.constant 1 : i32
    %0 = arith.muli %arg0, %c1_i32 : i32
    %1 = arith.addi %0, %arg1 : i32
    %c0_i32 = arith.constant 0 : i32
    %c0_i32_0 = arith.constant 0 : i32
    return %1, %c0_i32 : i32, i32
  }
  func.func @transform_1(%arg0: i32, %arg1: i32) -> (i32, i32) {
    %c1_i32 = arith.constant 1 : i32
    %0 = arith.muli %arg0, %c1_i32 : i32
    %1 = arith.addi %0, %arg1 : i32
    %c0_i32 = arith.constant 0 : i32
    %c0_i32_0 = arith.constant 0 : i32
    return %1, %c0_i32 : i32, i32
  }
  func.func @transform_2(%arg0: i32, %arg1: i32) -> (i32, i32) {
    %c1_i32 = arith.constant 1 : i32
    %0 = arith.muli %arg0, %c1_i32 : i32
    %1 = arith.addi %0, %arg1 : i32
    %c0_i32 = arith.constant 0 : i32
    %c0_i32_0 = arith.constant 0 : i32
    return %1, %c0_i32 : i32, i32
  }
  func.func @transform_3(%arg0: i32, %arg1: i32) -> (i32, i32) {
    %c1_i32 = arith.constant 1 : i32
    %0 = arith.muli %arg0, %c1_i32 : i32
    %1 = arith.addi %0, %arg1 : i32
    %c0_i32 = arith.constant 0 : i32
    %c0_i32_0 = arith.constant 0 : i32
    return %1, %c0_i32 : i32, i32
  }
  func.func @transform_4(%arg0: i32, %arg1: i32) -> (i32, i32) {
    %c1_i32 = arith.constant 1 : i32
    %0 = arith.muli %arg0, %c1_i32 : i32
    %1 = arith.addi %0, %arg1 : i32
    %c0_i32 = arith.constant 0 : i32
    %c0_i32_0 = arith.constant 0 : i32
    return %1, %c0_i32 : i32, i32
  }
  func.func @transform_5(%arg0: i32, %arg1: i32) -> (i32, i32) {
    %c1_i32 = arith.constant 1 : i32
    %0 = arith.muli %arg0, %c1_i32 : i32
    %1 = arith.addi %0, %arg1 : i32
    %c0_i32 = arith.constant 0 : i32
    %c0_i32_0 = arith.constant 0 : i32
    return %1, %c0_i32 : i32, i32
  }
  func.func @transform_6(%arg0: i32, %arg1: i32) -> (i32, i32) {
    %c1_i32 = arith.constant 1 : i32
    %0 = arith.muli %arg0, %c1_i32 : i32
    %1 = arith.addi %0, %arg1 : i32
    %c0_i32 = arith.constant 0 : i32
    %c0_i32_0 = arith.constant 0 : i32
    return %1, %c0_i32 : i32, i32
  }
  func.func @transform_7(%arg0: i32, %arg1: i32) -> (i32, i32) {
    %c1_i32 = arith.constant 1 : i32
    %0 = arith.muli %arg0, %c1_i32 : i32
    %1 = arith.addi %0, %arg1 : i32
    %c0_i32 = arith.constant 0 : i32
    %c0_i32_0 = arith.constant 0 : i32
    return %1, %c0_i32 : i32, i32
  }
  func.func @transform_8(%arg0: i32, %arg1: i32) -> (i32, i32) {
    %c0_i32 = arith.constant 0 : i32
    %c0_i32_0 = arith.constant 0 : i32
    return %arg0, %c0_i32 : i32, i32
  }
}

</mosaic_0001>

<llo_original>
// kernel: tpu_custom_call.1
$region0: #{tpu_custom_call.1}
  #allocation0 [shape = 'u32[]', space=smem, size = 0x4, offset = 0x4, fixed_abs, tag = 'smem constant byte address 0x4 - core index']
  #allocation1 [shape = 'u32[144,128]{1,0:T(1,128)}', space=vmem, size = 0x12000, scoped, tag = 'internal scratch']
  #allocation2 [shape = 'f32[16,128]{1,0:T(8,128)}', space=vmem, size = 0x2000, scoped, tag = 'scratch operand']
  %s0 = inlined_call_operand.hbm [shape: f32[16,128], index: 0, kind: input, shape index: {}]
  %s1 = inlined_call_operand.hbm [shape: f32[16,128], index: 1, kind: input, shape index: {}]
  %s2 = inlined_call_operand.hbm [shape: f32[16,128], index: 2, kind: input, shape index: {}]
  %s3 = inlined_call_operand.hbm [shape: f32[16,128], index: 3, kind: input, shape index: {}]
  %s4 = inlined_call_operand.hbm [shape: f32[16,128], index: 4, kind: input, shape index: {}]
  %s5 = inlined_call_operand.hbm [shape: f32[16,128], index: 5, kind: input, shape index: {}]
  %s6 = inlined_call_operand.hbm [shape: f32[16,128], index: 6, kind: input, shape index: {}]
  %s7 = inlined_call_operand.hbm [shape: f32[16,128], index: 7, kind: input, shape index: {}]
  %s8 = inlined_call_operand.hbm [shape: f32[1,1], index: 8, kind: output, shape index: {}]
  %s9 = sld [smem:[#allocation0]]
  $region82: #{tpu_custom_call.1} parent=0
    _
  %s11 = ssub.s32 1, %s9
  %s12 = scalar_select 0, %s11, %s9
  $region1: #{tpu_custom_call.1} parent=0
    #allocation3 [shape = 'u8[8192]{0}', space=vmem, size = 0x2000, scoped, tag = 'input window, operand 0, single buffered']
    #allocation4 [shape = 's32[1]{0}', space=sflag, size = 0x4, scoped, tag = 'scoped memory for tpu_custom_call.1']
    #allocation5 [shape = 's32[1]{0}', space=sflag, size = 0x4, scoped, tag = 'scoped memory for tpu_custom_call.1']
    #allocation6 [shape = 'u8[8192]{0}', space=vmem, size = 0x2000, scoped, tag = 'input window, operand 1, single buffered']
    #allocation7 [shape = 's32[1]{0}', space=sflag, size = 0x4, scoped, tag = 'scoped memory for tpu_custom_call.1']
    #allocation8 [shape = 'u8[8192]{0}', space=vmem, size = 0x2000, scoped, tag = 'input window, operand 2, single buffered']
    #allocation9 [shape = 'u8[8192]{0}', space=vmem, size = 0x2000, scoped, tag = 'input window, operand 3, single buffered']
    #allocation10 [shape = 's32[1]{0}', space=sflag, size = 0x4, scoped, tag = 'scoped memory for tpu_custom_call.1']
    #allocation11 [shape = 'u8[8192]{0}', space=vmem, size = 0x2000, scoped, tag = 'input window, operand 4, single buffered']
    #allocation12 [shape = 'u8[8192]{0}', space=vmem, size = 0x2000, scoped, tag = 'input window, operand 5, single buffered']
    #allocation13 [shape = 's32[1]{0}', space=sflag, size = 0x4, scoped, tag = 'scoped memory for tpu_custom_call.1']
    #allocation14 [shape = 'u8[8192]{0}', space=vmem, size = 0x2000, scoped, tag = 'input window, operand 6, single buffered']
    #allocation15 [shape = 'u8[8192]{0}', space=vmem, size = 0x2000, scoped, tag = 'input window, operand 7, single buffered']
    #allocation16 [shape = 's32[1]{0}', space=sflag, size = 0x4, scoped, tag = 'scoped memory for tpu_custom_call.1']
    #allocation17 [shape = 'u8[512]{0}', space=smem, size = 0x200, scoped, tag = 'output window, operand 0, single buffered']
    %13 = vsyncpa [#allocation4], 0
    %14 = vsyncpa [#allocation7], 0
    %15 = vsyncpa [#allocation10], 0
    %16 = vsyncpa [#allocation13], 0
    %17 = vsyncpa [#allocation16], 0
    %18 = vsyncpa [#allocation5], 0
    // Predicated region
    $region2: #{tpu_custom_call.1} parent=1 // pred_check
      _
    $region3: #{tpu_custom_call.1} parent=1 // pred_check_branch
      %20 = sbr.rel (0) target = $region5
    $region4: #{tpu_custom_call.1} parent=1 // pred_region
      %s21 = sadd.s32 0, 0
      %s22 = smul.u32 2, %s21
      %s24 = ssub.s32 256, 256
      %25 = vsyncadd [#allocation4], %s24
      %s26 = smul.addr %s22, 128
      %s27 = scalar_lea.hbm %s0, %s26
      %s28 = sshll.u32 [#allocation3], 4
      %s29 = int_to_ptr.vmem [resolvable:$true] %s28
      %34 = dma.hbm_to_vmem [thread:$0]  %s27, 256, %s29, [#allocation4], 128, 128, 8
    $region5: #{tpu_custom_call.1} parent=1 // pred_fallthru
      _
    // Predicated region
    $region6: #{tpu_custom_call.1} parent=1 // pred_check
      _
    $region7: #{tpu_custom_call.1} parent=1 // pred_check_branch
      %36 = sbr.rel (0) target = $region9
    $region8: #{tpu_custom_call.1} parent=1 // pred_region
      %s37 = sadd.s32 0, 0
      %s38 = smul.u32 2, %s37
      %s40 = ssub.s32 256, 256
      %41 = vsyncadd [#allocation7], %s40
      %s42 = smul.addr %s38, 128
      %s43 = scalar_lea.hbm %s1, %s42
      %s44 = sshll.u32 [#allocation6], 4
      %s45 = int_to_ptr.vmem [resolvable:$true] %s44
      %50 = dma.hbm_to_vmem [thread:$0]  %s43, 256, %s45, [#allocation7], 128, 128, 8
    $region9: #{tpu_custom_call.1} parent=1 // pred_fallthru
      _
    // Predicated region
    $region10: #{tpu_custom_call.1} parent=1 // pred_check
      _
    $region11: #{tpu_custom_call.1} parent=1 // pred_check_branch
      %52 = sbr.rel (0) target = $region13
    $region12: #{tpu_custom_call.1} parent=1 // pred_region
      %s53 = sadd.s32 0, 0
      %s54 = smul.u32 2, %s53
      %s56 = ssub.s32 256, 256
      %57 = vsyncadd [#allocation7], %s56
      %s58 = smul.addr %s54, 128
      %s59 = scalar_lea.hbm %s2, %s58
      %s60 = sshll.u32 [#allocation8], 4
      %s61 = int_to_ptr.vmem [resolvable:$true] %s60
      %66 = dma.hbm_to_vmem [thread:$0]  %s59, 256, %s61, [#allocation7], 128, 128, 8
    $region13: #{tpu_custom_call.1} parent=1 // pred_fallthru
      _
    // Predicated region
    $region14: #{tpu_custom_call.1} parent=1 // pred_check
      _
    $region15: #{tpu_custom_call.1} parent=1 // pred_check_branch
      %68 = sbr.rel (0) target = $region17
    $region16: #{tpu_custom_call.1} parent=1 // pred_region
      %s69 = sadd.s32 0, 0
      %s70 = smul.u32 2, %s69
      %s72 = ssub.s32 256, 256
      %73 = vsyncadd [#allocation10], %s72
      %s74 = smul.addr %s70, 128
      %s75 = scalar_lea.hbm %s3, %s74
      %s76 = sshll.u32 [#allocation9], 4
      %s77 = int_to_ptr.vmem [resolvable:$true] %s76
      %82 = dma.hbm_to_vmem [thread:$0]  %s75, 256, %s77, [#allocation10], 128, 128, 8
    $region17: #{tpu_custom_call.1} parent=1 // pred_fallthru
      _
    // Predicated region
    $region18: #{tpu_custom_call.1} parent=1 // pred_check
      _
    $region19: #{tpu_custom_call.1} parent=1 // pred_check_branch
      %84 = sbr.rel (0) target = $region21
    $region20: #{tpu_custom_call.1} parent=1 // pred_region
      %s85 = sadd.s32 0, 0
      %s86 = smul.u32 2, %s85
      %s88 = ssub.s32 256, 256
      %89 = vsyncadd [#allocation10], %s88
      %s90 = smul.addr %s86, 128
      %s91 = scalar_lea.hbm %s4, %s90
      %s92 = sshll.u32 [#allocation11], 4
      %s93 = int_to_ptr.vmem [resolvable:$true] %s92
      %98 = dma.hbm_to_vmem [thread:$0]  %s91, 256, %s93, [#allocation10], 128, 128, 8
    $region21: #{tpu_custom_call.1} parent=1 // pred_fallthru
      _
    // Predicated region
    $region22: #{tpu_custom_call.1} parent=1 // pred_check
      _
    $region23: #{tpu_custom_call.1} parent=1 // pred_check_branch
      %100 = sbr.rel (0) target = $region25
    $region24: #{tpu_custom_call.1} parent=1 // pred_region
      %s101 = sadd.s32 0, 0
      %s102 = smul.u32 2, %s101
      %s104 = ssub.s32 256, 256
      %105 = vsyncadd [#allocation13], %s104
      %s106 = smul.addr %s102, 128
      %s107 = scalar_lea.hbm %s5, %s106
      %s108 = sshll.u32 [#allocation12], 4
      %s109 = int_to_ptr.vmem [resolvable:$true] %s108
      %114 = dma.hbm_to_vmem [thread:$0]  %s107, 256, %s109, [#allocation13], 128, 128, 8
    $region25: #{tpu_custom_call.1} parent=1 // pred_fallthru
      _
    // Predicated region
    $region26: #{tpu_custom_call.1} parent=1 // pred_check
      _
    $region27: #{tpu_custom_call.1} parent=1 // pred_check_branch
      %116 = sbr.rel (0) target = $region29
    $region28: #{tpu_custom_call.1} parent=1 // pred_region
      %s117 = sadd.s32 0, 0
      %s118 = smul.u32 2, %s117
      %s120 = ssub.s32 256, 256
      %121 = vsyncadd [#allocation13], %s120
      %s122 = smul.addr %s118, 128
      %s123 = scalar_lea.hbm %s6, %s122
      %s124 = sshll.u32 [#allocation14], 4
      %s125 = int_to_ptr.vmem [resolvable:$true] %s124
      %130 = dma.hbm_to_vmem [thread:$0]  %s123, 256, %s125, [#allocation13], 128, 128, 8
    $region29: #{tpu_custom_call.1} parent=1 // pred_fallthru
      _
    // Predicated region
    $region30: #{tpu_custom_call.1} parent=1 // pred_check
      _
    $region31: #{tpu_custom_call.1} parent=1 // pred_check_branch
      %132 = sbr.rel (0) target = $region33
    $region32: #{tpu_custom_call.1} parent=1 // pred_region
      %s133 = sadd.s32 0, 0
      %s134 = smul.u32 2, %s133
      %s136 = ssub.s32 256, 256
      %137 = vsyncadd [#allocation16], %s136
      %s138 = smul.addr %s134, 128
      %s139 = scalar_lea.hbm %s7, %s138
      %s140 = sshll.u32 [#allocation15], 4
      %s141 = int_to_ptr.vmem [resolvable:$true] %s140
      %146 = dma.hbm_to_vmem [thread:$0]  %s139, 256, %s141, [#allocation16], 128, 128, 8
    $region33: #{tpu_custom_call.1} parent=1 // pred_fallthru
      _
    // Predicated region
    $region34: #{tpu_custom_call.1} parent=1 // pred_check
      _
    $region35: #{tpu_custom_call.1} parent=1 // pred_check_branch
      %148 = sbr.rel (0) target = $region37
    $region36: #{tpu_custom_call.1} parent=1 // pred_region
      %149 = dma.done [#allocation4], 256
    $region37: #{tpu_custom_call.1} parent=1 // pred_fallthru
      _
    // Predicated region
    $region38: #{tpu_custom_call.1} parent=1 // pred_check
      _
    $region39: #{tpu_custom_call.1} parent=1 // pred_check_branch
      %151 = sbr.rel (0) target = $region41
    $region40: #{tpu_custom_call.1} parent=1 // pred_region
      %152 = dma.done [#allocation7], 256
    $region41: #{tpu_custom_call.1} parent=1 // pred_fallthru
      _
    // Predicated region
    $region42: #{tpu_custom_call.1} parent=1 // pred_check
      _
    $region43: #{tpu_custom_call.1} parent=1 // pred_check_branch
      %154 = sbr.rel (0) target = $region45
    $region44: #{tpu_custom_call.1} parent=1 // pred_region
      %155 = dma.done [#allocation7], 256
    $region45: #{tpu_custom_call.1} parent=1 // pred_fallthru
      _
    // Predicated region
    $region46: #{tpu_custom_call.1} parent=1 // pred_check
      _
    $region47: #{tpu_custom_call.1} parent=1 // pred_check_branch
      %157 = sbr.rel (0) target = $region49
    $region48: #{tpu_custom_call.1} parent=1 // pred_region
      %158 = dma.done [#allocation10], 256
    $region49: #{tpu_custom_call.1} parent=1 // pred_fallthru
      _
    // Predicated region
    $region50: #{tpu_custom_call.1} parent=1 // pred_check
      _
    $region51: #{tpu_custom_call.1} parent=1 // pred_check_branch
      %160 = sbr.rel (0) target = $region53
    $region52: #{tpu_custom_call.1} parent=1 // pred_region
      %161 = dma.done [#allocation10], 256
    $region53: #{tpu_custom_call.1} parent=1 // pred_fallthru
      _
    // Predicated region
    $region54: #{tpu_custom_call.1} parent=1 // pred_check
      _
    $region55: #{tpu_custom_call.1} parent=1 // pred_check_branch
      %163 = sbr.rel (0) target = $region57
    $region56: #{tpu_custom_call.1} parent=1 // pred_region
      %164 = dma.done [#allocation13], 256
    $region57: #{tpu_custom_call.1} parent=1 // pred_fallthru
      _
    // Predicated region
    $region58: #{tpu_custom_call.1} parent=1 // pred_check
      _
    $region59: #{tpu_custom_call.1} parent=1 // pred_check_branch
      %166 = sbr.rel (0) target = $region61
    $region60: #{tpu_custom_call.1} parent=1 // pred_region
      %167 = dma.done [#allocation13], 256
    $region61: #{tpu_custom_call.1} parent=1 // pred_fallthru
      _
    // Predicated region
    $region62: #{tpu_custom_call.1} parent=1 // pred_check
      _
    $region63: #{tpu_custom_call.1} parent=1 // pred_check_branch
      %169 = sbr.rel (0) target = $region65
    $region64: #{tpu_custom_call.1} parent=1 // pred_region
      %170 = dma.done [#allocation16], 256
    $region65: #{tpu_custom_call.1} parent=1 // pred_fallthru
      _
    %s171 = sadd.s32 0, 0
    %s172 = smul.u32 2, %s171
    %s173 = sadd.s32 0, 0
    %s174 = smul.u32 2, %s173
    %s175 = sadd.s32 0, 0
    %s176 = smul.u32 2, %s175
    %s177 = sadd.s32 0, 0
    %s178 = smul.u32 2, %s177
    %s179 = sadd.s32 0, 0
    %s180 = smul.u32 2, %s179
    %s181 = sadd.s32 0, 0
    %s182 = smul.u32 2, %s181
    %s183 = sadd.s32 0, 0
    %s184 = smul.u32 2, %s183
    %s185 = sadd.s32 0, 0
    %s186 = smul.u32 2, %s185
    %p187 = scmp.eq.s32.totalorder 0, 0
    // Predicated region
    $region66: #{tpu_custom_call.1} parent=1 // pred_check
      %p188 = pneg %p187
    $region67: #{tpu_custom_call.1} parent=1 // pred_check_branch
      %190 = sbr.rel (%p188) target = $region69
    $region68: #{tpu_custom_call.1} parent=1 // pred_region
      %191 = vst [vmem:[#allocation2] sm:$0xff] 0.0
      %192 = vst [vmem:[#allocation2 + $0x8] sm:$0xff] 0.0
    $region69: #{tpu_custom_call.1} parent=1 // pred_fallthru
      _
    %v193 = vld [vmem:[#allocation2] sm:$0xff]
    %v194 = vld [vmem:[#allocation2 + $0x8] sm:$0xff]
    %v195 = vld [vmem:[#allocation3] sm:$0xff]
    %v196 = vld [vmem:[#allocation3 + $0x8] sm:$0xff]
    %v197 = vld [vmem:[#allocation6] sm:$0xff]
    %v198 = vld [vmem:[#allocation6 + $0x8] sm:$0xff]
    %v199 = vsub.f32 %v195, %v197
    %v200 = vsub.f32 %v196, %v198
    %v201 = vmul.f32 %v199, %v199
    %v202 = vmul.f32 %v200, %v200
    %v203 = vld [vmem:[#allocation8] sm:$0xff]
    %v204 = vld [vmem:[#allocation8 + $0x8] sm:$0xff]
    %v205 = vld [vmem:[#allocation9] sm:$0xff]
    %v206 = vld [vmem:[#allocation9 + $0x8] sm:$0xff]
    %v207 = vsub.f32 %v203, %v205
    %v208 = vsub.f32 %v204, %v206
    %v209 = vmul.f32 %v207, %v207
    %v210 = vmul.f32 %v208, %v208
    %v211 = vadd.f32 %v201, %v209
    %v212 = vadd.f32 %v202, %v210
    %v213 = vld [vmem:[#allocation11] sm:$0xff]
    %v214 = vld [vmem:[#allocation11 + $0x8] sm:$0xff]
    %v215 = vld [vmem:[#allocation12] sm:$0xff]
    %v216 = vld [vmem:[#allocation12 + $0x8] sm:$0xff]
    %v217 = vsub.f32 %v213, %v215
    %v218 = vsub.f32 %v214, %v216
    %v219 = vmul.f32 %v217, %v217
    %v220 = vmul.f32 %v218, %v218
    %v221 = vadd.f32 %v211, %v219
    %v222 = vadd.f32 %v212, %v220
    %v223 = vld [vmem:[#allocation14] sm:$0xff]
    %v224 = vld [vmem:[#allocation14 + $0x8] sm:$0xff]
    %v225 = vld [vmem:[#allocation15] sm:$0xff]
    %v226 = vld [vmem:[#allocation15 + $0x8] sm:$0xff]
    %v227 = vsub.f32 %v223, %v225
    %v228 = vsub.f32 %v224, %v226
    %v229 = vmul.f32 %v227, %v227
    %v230 = vmul.f32 %v228, %v228
    %v231 = vadd.f32 %v221, %v229
    %v232 = vadd.f32 %v222, %v230
    %v233 = vadd.f32 %v193, %v231
    %v234 = vadd.f32 %v194, %v232
    %235 = vst [vmem:[#allocation2] sm:$0xff] %v233
    %236 = vst [vmem:[#allocation2 + $0x8] sm:$0xff] %v234
    // Predicated region
    $region70: #{tpu_custom_call.1} parent=1 // pred_check
      %p237 = pneg %p187
    $region71: #{tpu_custom_call.1} parent=1 // pred_check_branch
      %239 = sbr.rel (%p237) target = $region73
    $region72: #{tpu_custom_call.1} parent=1 // pred_region
      %v240 = vld [vmem:[#allocation2] sm:$0xff]
      %v241 = vld [vmem:[#allocation2 + $0x8] sm:$0xff]
      %v242 = vadd.f32 %v240, %v241
      %243 = vadd.xlane.f32.xlu0 %v242
      %v244 = vpop.xlane.xlu0 %243
      %v245 = vrot.slane %v244, 4
      %v246 = vadd.f32 %v244, %v245
      %v247 = vrot.slane %v246, 2
      %v248 = vadd.f32 %v246, %v247
      %v249 = vrot.slane %v248, 1
      %v250 = vadd.f32 %v248, %v249
      %s251 = vtos %v250
      %s252 = scalar_lea.smem [#allocation17], 0
      %253 = sst [smem:[%s252]] %s251
    $region73: #{tpu_custom_call.1} parent=1 // pred_fallthru
      _
    // Predicated region
    $region74: #{tpu_custom_call.1} parent=1 // pred_check
      _
    $region75: #{tpu_custom_call.1} parent=1 // pred_check_branch
      %255 = sbr.rel (0) target = $region77
    $region76: #{tpu_custom_call.1} parent=1 // pred_region
      %s257 = ssub.s32 16, 16
      %258 = vsyncadd [#allocation5], %s257
      %261 = dma.smem_to_hbm [#allocation17], 16, %s8, [#allocation5]
    $region77: #{tpu_custom_call.1} parent=1 // pred_fallthru
      _
    // Predicated region
    $region78: #{tpu_custom_call.1} parent=1 // pred_check
      _
    $region79: #{tpu_custom_call.1} parent=1 // pred_check_branch
      %263 = sbr.rel (0) target = $region81
    $region80: #{tpu_custom_call.1} parent=1 // pred_region
      %264 = dma.done [#allocation5], 16
    $region81: #{tpu_custom_call.1} parent=1 // pred_fallthru
      _
    %265 = sfence
    %266 = vsyncpa [#allocation4], 1
    %267 = vsyncpa [#allocation7], 1
    %268 = vsyncpa [#allocation10], 1
    %269 = vsyncpa [#allocation13], 1
    %270 = vsyncpa [#allocation16], 1
    %271 = vsyncpa [#allocation5], 1

</llo_original>
